<compile_context>
chip_gen: v6e
topology: v6e:2x2x1
jax: 0.10.0
libtpu: 0.0.40
codegen_flags: <defaults>
</compile_context>

<pallas_src>
import functools
import math

import jax
import jax.numpy as jnp
from jax import lax
from jax.experimental import pallas as pl
from jax.experimental.pallas import tpu as pltpu


def _label_smoothing_kernel(tgt_ref, logp_ref, out_ref, acc_ref, *,
                            B, V, batch_tile, vocab_tile, row_grp,
                            smoothing_value, c_tgt, base_const, edge_const,
                            ignore_index, pad_col):
    i = pl.program_id(0)          # batch tile   ("parallel")
    j = pl.program_id(1)          # vocab tile   ("arbitrary", innermost)

    lane_iota = lax.broadcasted_iota(jnp.int32, (1, 128), 1)

    num_vt = -(-V // vocab_tile)
    last = num_vt - 1
    last_cols = V - last * vocab_tile
    pad_tile = pad_col // vocab_tile
    pad_loc = pad_col % vocab_tile

    @pl.when(j == 0)
    def _init():
        acc_ref[...] = jnp.zeros_like(acc_ref)

    def make_body(valid_cols, handle_pad):
        # Accumulate  sum_v w_v * logp[b, v]  for the columns of this tile.
        def body():
            tloc_all = tgt_ref[...] - j * vocab_tile          # (bt, 1) int32
            for r0 in range(0, batch_tile, row_grp):          # row groups keep
                tloc = tloc_all[r0:r0 + row_grp]              # vreg live-set small
                part = jnp.zeros((row_grp, 128), jnp.float32)
                for s in range(0, valid_cols, 128):
                    col = lane_iota + s                       # (1,128) const-ish
                    lp = logp_ref[r0:r0 + row_grp, s:s + 128].astype(jnp.float32)
                    if s + 128 > valid_cols:                  # static: tail slice only
                        lp = jnp.where(col < valid_cols, lp, 0.0)
                    if handle_pad and s <= pad_loc < s + 128:  # static: pad slice only
                        w0 = jnp.where(col == pad_loc, 0.0, 1.0)
                    else:
                        w0 = 1.0
                    w = jnp.where(col == tloc, c_tgt, w0)     # target override last
                    part = part + w * lp                      # 4 VPU ops / element
                acc_ref[r0:r0 + row_grp, :] += part
        return body

    if num_vt == 1:
        make_body(V, True)()
    elif pad_tile == last:
        pl.when(j == last)(make_body(last_cols, True))
        pl.when(j != last)(make_body(vocab_tile, False))
    elif last_cols == vocab_tile:
        pl.when(j == pad_tile)(make_body(vocab_tile, True))
        pl.when(j != pad_tile)(make_body(vocab_tile, False))
    else:
        pl.when(j == pad_tile)(make_body(vocab_tile, True))
        pl.when(j == last)(make_body(last_cols, False))
        pl.when(jnp.logical_and(j != pad_tile, j != last))(
            make_body(vocab_tile, False))

    @pl.when(j == last)
    def _finalize():
        tgt = tgt_ref[...]                                    # (bt, 1) int32
        res = acc_ref[...] * jnp.float32(-smoothing_value)    # (bt, 128)
        cvec = jnp.full((batch_tile, 1), base_const, jnp.float32)
        if pad_col != ignore_index:
            # target lands on the wrapped padding column (negative ignore_index)
            cvec = jnp.where(
                jnp.logical_and(tgt == pad_col, tgt != ignore_index),
                cvec + jnp.float32(edge_const), cvec)
        res = jnp.where(lane_iota == 0, res + cvec, res)      # row constant -> lane 0
        valid = tgt != ignore_index
        if B % batch_tile != 0:
            row = i * batch_tile + lax.broadcasted_iota(
                jnp.int32, (batch_tile, 1), 0)
            valid = jnp.logical_and(valid, row < B)
        out_ref[...] = jnp.where(valid, res, jnp.float32(0.0))


def _round_up(x, m):
    return -(-x // m) * m


def _choose_tiles(B, V):
    vocab_tile = min(8192, _round_up(V, 128))
    bt = min(256, _round_up(B, 8))
    if B >= 16:
        # ensure >= 2 batch tiles so the "parallel" axis can shard across
        # v7x's two TensorCores
        bt = min(bt, _round_up(-(-B // 2), 8))
    if bt > 64:
        bt = max(64, (bt // 64) * 64)   # row-group structure needs multiples of 64
    return bt, vocab_tile


def label_smoothing_loss(output, target, *, label_smoothing, tgt_vocab_size,
                         ignore_index=-100):
    """output: (B, V) log-probs (f32 or bf16), target: (B,) int. Returns scalar f32."""
    B, V = output.shape
    assert V == tgt_vocab_size
    assert 0.0 < label_smoothing <= 1.0
    assert V >= 3

    batch_tile, vocab_tile = _choose_tiles(B, V)
    num_bt = -(-B // batch_tile)
    num_vt = -(-V // vocab_tile)
    row_grp = 64 if batch_tile % 64 == 0 else batch_tile

    confidence = 1.0 - label_smoothing
    smoothing_value = label_smoothing / (V - 2)
    log_smooth = math.log(smoothing_value)
    base_const = label_smoothing * log_smooth            # = smooth*(V-2)*log_smooth
    if confidence > 0.0:
        base_const += confidence * math.log(confidence)
    c_tgt = confidence / smoothing_value                  # target-lane weight
    edge_const = smoothing_value * log_smooth
    pad_col = ignore_index % V                            # wraps negative ignore_index

    tgt2d = target.astype(jnp.int32).reshape(B, 1)

    kernel = functools.partial(
        _label_smoothing_kernel,
        B=B, V=V, batch_tile=batch_tile, vocab_tile=vocab_tile, row_grp=row_grp,
        smoothing_value=smoothing_value, c_tgt=c_tgt, base_const=base_const,
        edge_const=edge_const, ignore_index=int(ignore_index), pad_col=pad_col)

    partials = pl.pallas_call(
        kernel,
        out_shape=jax.ShapeDtypeStruct((num_bt * batch_tile, 128), jnp.float32),
        grid_spec=pltpu.PrefetchScalarGridSpec(
            num_scalar_prefetch=0,
            grid=(num_bt, num_vt),                        # vocab (reduction) axis last
            in_specs=[
                pl.BlockSpec((batch_tile, 1), lambda i, j: (i, 0)),
                pl.BlockSpec((batch_tile, vocab_tile), lambda i, j: (i, j)),
            ],
            out_specs=pl.BlockSpec((batch_tile, 128), lambda i, j: (i, 0)),
            scratch_shapes=[pltpu.VMEM((batch_tile, 128), jnp.float32)],
        ),
        compiler_params=pltpu.CompilerParams(
            dimension_semantics=("parallel", "arbitrary"),
            vmem_limit_bytes=48 * 1024 * 1024,
        ),
    )(tgt2d, output)

    return jnp.sum(partials)


def _reference(output, target, *, label_smoothing, tgt_vocab_size, ignore_index):
    """Pure-JAX reference mirroring the PyTorch forward."""
    B, V = output.shape
    out = output.astype(jnp.float32)
    confidence = 1.0 - label_smoothing
    smoothing_value = label_smoothing / (tgt_vocab_size - 2)
    one_hot = jnp.full((V,), smoothing_value, dtype=jnp.float32)
    one_hot = one_hot.at[ignore_index].set(0.0)           # negative index wraps
    model_prob = jnp.tile(one_hot[None, :], (B, 1))
    model_prob = model_prob.at[jnp.arange(B), target % V].set(confidence)
    model_prob = jnp.where((target == ignore_index)[:, None], 0.0, model_prob)
    pointwise = jnp.where(model_prob > 0,
                          model_prob * (jnp.log(model_prob) - out), 0.0)
    return jnp.sum(pointwise)


if __name__ == "__main__":
    key = jax.random.PRNGKey(0)
    k1, k2, k3, k4 = jax.random.split(key, 4)

    # --- case 1: B=64, V=1024, f32 log-probs, ignore_index=0 ---------------
    B, V = 64, 1024
    logits = jax.random.normal(k1, (B, V), dtype=jnp.float32)
    logp = jax.nn.log_softmax(logits, axis=-1)
    target = jax.random.randint(k2, (B,), 0, V, dtype=jnp.int32)
    target = target.at[3].set(0).at[11].set(0)            # padding rows
    loss = label_smoothing_loss(logp, target, label_smoothing=0.1,
                                tgt_vocab_size=V, ignore_index=0)
    loss = jax.block_until_ready(loss)
    ref = _reference(logp, target, label_smoothing=0.1,
                     tgt_vocab_size=V, ignore_index=0)
    assert jnp.allclose(loss, ref, rtol=2e-4, atol=1e-2), ("case1", loss, ref)

    # --- case 2: ragged B=20, V=700, bf16 log-probs, ignore_index=-100 -----
    B, V = 20, 700
    logits = jax.random.normal(k3, (B, V), dtype=jnp.float32)
    logp = jax.nn.log_softmax(logits, axis=-1).astype(jnp.bfloat16)
    target = jax.random.randint(k4, (B,), 0, V, dtype=jnp.int32)
    target = target.at[3].set(-100)                       # padded row
    target = target.at[5].set((-100) % V)                 # hits wrapped pad column
    loss2 = label_smoothing_loss(logp, target, label_smoothing=0.1,
                                 tgt_vocab_size=V, ignore_index=-100)
    loss2 = jax.block_until_ready(loss2)
    ref2 = _reference(logp.astype(jnp.float32), target, label_smoothing=0.1,
                      tgt_vocab_size=V, ignore_index=-100)
    assert jnp.allclose(loss2, ref2, rtol=2e-4, atol=1e-2), ("case2", loss2, ref2)

    print("KERNEL_OK")
</pallas_src>

<mosaic_0001>
module attributes {stable_mosaic.version = 11 : i64} {
  func.func @_label_smoothing_kernel(%arg0: i32, %arg1: i32, %arg2: memref<32x1xi32, #tpu.memory_space<vmem>>, %arg3: memref<32x1024xf32, #tpu.memory_space<vmem>>, %arg4: memref<32x128xf32, #tpu.memory_space<vmem>>, %arg5: memref<32x128xf32, #tpu.memory_space<vmem>>) attributes {dimension_semantics = [#tpu.dimension_semantics<parallel>, #tpu.dimension_semantics<arbitrary>], iteration_bounds = array<i64: 2, 1>, scalar_prefetch = 0 : i64, scratch_operands = 1 : i64, tpu.core_type = #tpu.core_type<tc>, window_params = [{transform_indices = @transform_0, window_bounds = array<i64: 32, 1>}, {transform_indices = @transform_1, window_bounds = array<i64: 32, 1024>}, {transform_indices = @transform_2, window_bounds = array<i64: 32, 128>}]} {
    %0 = tpu.iota {dimensions = array<i32: 1>} : vector<1x128xi32>
    %c0_i32 = arith.constant 0 : i32
    %1 = arith.cmpi eq, %arg1, %c0_i32 : i32
    %2 = arith.extui %1 : i1 to i32
    %c0_i32_0 = arith.constant 0 : i32
    %3 = arith.cmpi ne, %2, %c0_i32_0 : i32
    scf.if %3 {
      %cst_36 = arith.constant 0.000000e+00 : f32
      %109 = vector.broadcast %cst_36 : f32 to vector<32x128xf32>
      %c0_37 = arith.constant 0 : index
      %c0_38 = arith.constant 0 : index
      %110 = vector.load %arg5[%c0_37, %c0_38] : memref<32x128xf32, #tpu.memory_space<vmem>>, vector<32x128xf32>
      tpu.vector_store %arg5[%c0_37, %c0_38], %109 {strides = array<i32>} : memref<32x128xf32, #tpu.memory_space<vmem>>, vector<32x128xf32>,
    } else {
    }
    %c0 = arith.constant 0 : index
    %c0_1 = arith.constant 0 : index
    %4 = vector.load %arg2[%c0, %c0_1] : memref<32x1xi32, #tpu.memory_space<vmem>>, vector<32x1xi32>
    %c1024_i32 = arith.constant 1024 : i32
    %5 = arith.muli %arg1, %c1024_i32 : i32
    %6 = vector.broadcast %5 : i32 to vector<32x1xi32>
    %7 = arith.subi %4, %6 : vector<32x1xi32>
    %cst = arith.constant 0.000000e+00 : f32
    %8 = vector.broadcast %cst : f32 to vector<32x128xf32>
    %c0_i32_2 = arith.constant 0 : i32
    %9 = vector.broadcast %c0_i32_2 : i32 to vector<1x128xi32>
    %10 = arith.addi %0, %9 : vector<1x128xi32>
    %c0_3 = arith.constant 0 : index
    %c0_4 = arith.constant 0 : index
    %11 = vector.load %arg3[%c0_3, %c0_4] : memref<32x1024xf32, #tpu.memory_space<vmem>>, vector<32x128xf32>
    %c0_i32_5 = arith.constant 0 : i32
    %12 = vector.broadcast %c0_i32_5 : i32 to vector<1x128xi32>
    %13 = arith.cmpi eq, %10, %12 : vector<1x128xi32>
    %cst_6 = arith.constant 0.000000e+00 : f32
    %cst_7 = arith.constant 1.000000e+00 : f32
    %14 = vector.broadcast %cst_6 : f32 to vector<1x128xf32>
    %15 = vector.broadcast %cst_7 : f32 to vector<1x128xf32>
    %16 = arith.select %13, %14, %15 : vector<1x128xi1>, vector<1x128xf32>
    %17 = vector.broadcast %10 : vector<1x128xi32> to vector<32x128xi32>
    %18 = vector.broadcast %7 : vector<32x1xi32> to vector<32x128xi32>
    %19 = arith.cmpi eq, %17, %18 : vector<32x128xi32>
    %cst_8 = arith.constant 9.198000e+03 : f32
    %20 = vector.broadcast %cst_8 : f32 to vector<32x128xf32>
    %21 = vector.shape_cast %16 : vector<1x128xf32> to vector<1x128xf32>
    %22 = vector.broadcast %21 : vector<1x128xf32> to vector<32x128xf32>
    %23 = arith.select %19, %20, %22 : vector<32x128xi1>, vector<32x128xf32>
    %24 = arith.mulf %23, %11 : vector<32x128xf32>
    %25 = arith.addf %8, %24 : vector<32x128xf32>
    %c128_i32 = arith.constant 128 : i32
    %26 = vector.broadcast %c128_i32 : i32 to vector<1x128xi32>
    %27 = arith.addi %0, %26 : vector<1x128xi32>
    %c0_9 = arith.constant 0 : index
    %c128 = arith.constant 128 : index
    %28 = vector.load %arg3[%c0_9, %c128] : memref<32x1024xf32, #tpu.memory_space<vmem>>, vector<32x128xf32>
    %29 = vector.broadcast %27 : vector<1x128xi32> to vector<32x128xi32>
    %30 = vector.broadcast %7 : vector<32x1xi32> to vector<32x128xi32>
    %31 = arith.cmpi eq, %29, %30 : vector<32x128xi32>
    %cst_10 = arith.constant 9.198000e+03 : f32
    %cst_11 = arith.constant 1.000000e+00 : f32
    %32 = vector.broadcast %cst_10 : f32 to vector<32x128xf32>
    %33 = vector.broadcast %cst_11 : f32 to vector<32x128xf32>
    %34 = arith.select %31, %32, %33 : vector<32x128xi1>, vector<32x128xf32>
    %35 = arith.mulf %34, %28 : vector<32x128xf32>
    %36 = arith.addf %25, %35 : vector<32x128xf32>
    %c256_i32 = arith.constant 256 : i32
    %37 = vector.broadcast %c256_i32 : i32 to vector<1x128xi32>
    %38 = arith.addi %0, %37 : vector<1x128xi32>
    %c0_12 = arith.constant 0 : index
    %c256 = arith.constant 256 : index
    %39 = vector.load %arg3[%c0_12, %c256] : memref<32x1024xf32, #tpu.memory_space<vmem>>, vector<32x128xf32>
    %40 = vector.broadcast %38 : vector<1x128xi32> to vector<32x128xi32>
    %41 = vector.broadcast %7 : vector<32x1xi32> to vector<32x128xi32>
    %42 = arith.cmpi eq, %40, %41 : vector<32x128xi32>
    %cst_13 = arith.constant 9.198000e+03 : f32
    %cst_14 = arith.constant 1.000000e+00 : f32
    %43 = vector.broadcast %cst_13 : f32 to vector<32x128xf32>
    %44 = vector.broadcast %cst_14 : f32 to vector<32x128xf32>
    %45 = arith.select %42, %43, %44 : vector<32x128xi1>, vector<32x128xf32>
    %46 = arith.mulf %45, %39 : vector<32x128xf32>
    %47 = arith.addf %36, %46 : vector<32x128xf32>
    %c384_i32 = arith.constant 384 : i32
    %48 = vector.broadcast %c384_i32 : i32 to vector<1x128xi32>
    %49 = arith.addi %0, %48 : vector<1x128xi32>
    %c0_15 = arith.constant 0 : index
    %c384 = arith.constant 384 : index
    %50 = vector.load %arg3[%c0_15, %c384] : memref<32x1024xf32, #tpu.memory_space<vmem>>, vector<32x128xf32>
    %51 = vector.broadcast %49 : vector<1x128xi32> to vector<32x128xi32>
    %52 = vector.broadcast %7 : vector<32x1xi32> to vector<32x128xi32>
    %53 = arith.cmpi eq, %51, %52 : vector<32x128xi32>
    %cst_16 = arith.constant 9.198000e+03 : f32
    %cst_17 = arith.constant 1.000000e+00 : f32
    %54 = vector.broadcast %cst_16 : f32 to vector<32x128xf32>
    %55 = vector.broadcast %cst_17 : f32 to vector<32x128xf32>
    %56 = arith.select %53, %54, %55 : vector<32x128xi1>, vector<32x128xf32>
    %57 = arith.mulf %56, %50 : vector<32x128xf32>
    %58 = arith.addf %47, %57 : vector<32x128xf32>
    %c512_i32 = arith.constant 512 : i32
    %59 = vector.broadcast %c512_i32 : i32 to vector<1x128xi32>
    %60 = arith.addi %0, %59 : vector<1x128xi32>
    %c0_18 = arith.constant 0 : index
    %c512 = arith.constant 512 : index
    %61 = vector.load %arg3[%c0_18, %c512] : memref<32x1024xf32, #tpu.memory_space<vmem>>, vector<32x128xf32>
    %62 = vector.broadcast %60 : vector<1x128xi32> to vector<32x128xi32>
    %63 = vector.broadcast %7 : vector<32x1xi32> to vector<32x128xi32>
    %64 = arith.cmpi eq, %62, %63 : vector<32x128xi32>
    %cst_19 = arith.constant 9.198000e+03 : f32
    %cst_20 = arith.constant 1.000000e+00 : f32
    %65 = vector.broadcast %cst_19 : f32 to vector<32x128xf32>
    %66 = vector.broadcast %cst_20 : f32 to vector<32x128xf32>
    %67 = arith.select %64, %65, %66 : vector<32x128xi1>, vector<32x128xf32>
    %68 = arith.mulf %67, %61 : vector<32x128xf32>
    %69 = arith.addf %58, %68 : vector<32x128xf32>
    %c640_i32 = arith.constant 640 : i32
    %70 = vector.broadcast %c640_i32 : i32 to vector<1x128xi32>
    %71 = arith.addi %0, %70 : vector<1x128xi32>
    %c0_21 = arith.constant 0 : index
    %c640 = arith.constant 640 : index
    %72 = vector.load %arg3[%c0_21, %c640] : memref<32x1024xf32, #tpu.memory_space<vmem>>, vector<32x128xf32>
    %73 = vector.broadcast %71 : vector<1x128xi32> to vector<32x128xi32>
    %74 = vector.broadcast %7 : vector<32x1xi32> to vector<32x128xi32>
    %75 = arith.cmpi eq, %73, %74 : vector<32x128xi32>
    %cst_22 = arith.constant 9.198000e+03 : f32
    %cst_23 = arith.constant 1.000000e+00 : f32
    %76 = vector.broadcast %cst_22 : f32 to vector<32x128xf32>
    %77 = vector.broadcast %cst_23 : f32 to vector<32x128xf32>
    %78 = arith.select %75, %76, %77 : vector<32x128xi1>, vector<32x128xf32>
    %79 = arith.mulf %78, %72 : vector<32x128xf32>
    %80 = arith.addf %69, %79 : vector<32x128xf32>
    %c768_i32 = arith.constant 768 : i32
    %81 = vector.broadcast %c768_i32 : i32 to vector<1x128xi32>
    %82 = arith.addi %0, %81 : vector<1x128xi32>
    %c0_24 = arith.constant 0 : index
    %c768 = arith.constant 768 : index
    %83 = vector.load %arg3[%c0_24, %c768] : memref<32x1024xf32, #tpu.memory_space<vmem>>, vector<32x128xf32>
    %84 = vector.broadcast %82 : vector<1x128xi32> to vector<32x128xi32>
    %85 = vector.broadcast %7 : vector<32x1xi32> to vector<32x128xi32>
    %86 = arith.cmpi eq, %84, %85 : vector<32x128xi32>
    %cst_25 = arith.constant 9.198000e+03 : f32
    %cst_26 = arith.constant 1.000000e+00 : f32
    %87 = vector.broadcast %cst_25 : f32 to vector<32x128xf32>
    %88 = vector.broadcast %cst_26 : f32 to vector<32x128xf32>
    %89 = arith.select %86, %87, %88 : vector<32x128xi1>, vector<32x128xf32>
    %90 = arith.mulf %89, %83 : vector<32x128xf32>
    %91 = arith.addf %80, %90 : vector<32x128xf32>
    %c896_i32 = arith.constant 896 : i32
    %92 = vector.broadcast %c896_i32 : i32 to vector<1x128xi32>
    %93 = arith.addi %0, %92 : vector<1x128xi32>
    %c0_27 = arith.constant 0 : index
    %c896 = arith.constant 896 : index
    %94 = vector.load %arg3[%c0_27, %c896] : memref<32x1024xf32, #tpu.memory_space<vmem>>, vector<32x128xf32>
    %95 = vector.broadcast %93 : vector<1x128xi32> to vector<32x128xi32>
    %96 = vector.broadcast %7 : vector<32x1xi32> to vector<32x128xi32>
    %97 = arith.cmpi eq, %95, %96 : vector<32x128xi32>
    %cst_28 = arith.constant 9.198000e+03 : f32
    %cst_29 = arith.constant 1.000000e+00 : f32
    %98 = vector.broadcast %cst_28 : f32 to vector<32x128xf32>
    %99 = vector.broadcast %cst_29 : f32 to vector<32x128xf32>
    %100 = arith.select %97, %98, %99 : vector<32x128xi1>, vector<32x128xf32>
    %101 = arith.mulf %100, %94 : vector<32x128xf32>
    %102 = arith.addf %91, %101 : vector<32x128xf32>
    %c0_30 = arith.constant 0 : index
    %c0_31 = arith.constant 0 : index
    %103 = vector.load %arg5[%c0_30, %c0_31] : memref<32x128xf32, #tpu.memory_space<vmem>>, vector<32x128xf32>
    %104 = arith.addf %103, %102 : vector<32x128xf32>
    %c0_32 = arith.constant 0 : index
    %c0_33 = arith.constant 0 : index
    %105 = vector.load %arg5[%c0_32, %c0_33] : memref<32x128xf32, #tpu.memory_space<vmem>>, vector<32x128xf32>
    tpu.vector_store %arg5[%c0_32, %c0_33], %104 {strides = array<i32>} : memref<32x128xf32, #tpu.memory_space<vmem>>, vector<32x128xf32>,
    %c0_i32_34 = arith.constant 0 : i32
    %106 = arith.cmpi eq, %arg1, %c0_i32_34 : i32
    %107 = arith.extui %106 : i1 to i32
    %c0_i32_35 = arith.constant 0 : i32
    %108 = arith.cmpi ne, %107, %c0_i32_35 : i32
    scf.if %108 {
      %c0_36 = arith.constant 0 : index
      %c0_37 = arith.constant 0 : index
      %109 = vector.load %arg2[%c0_36, %c0_37] : memref<32x1xi32, #tpu.memory_space<vmem>>, vector<32x1xi32>
      %c0_38 = arith.constant 0 : index
      %c0_39 = arith.constant 0 : index
      %110 = vector.load %arg5[%c0_38, %c0_39] : memref<32x128xf32, #tpu.memory_space<vmem>>, vector<32x128xf32>
      %cst_40 = arith.constant -9.78473617E-5 : f32
      %111 = vector.broadcast %cst_40 : f32 to vector<32x128xf32>
      %112 = arith.mulf %110, %111 : vector<32x128xf32>
      %cst_41 = arith.constant -1.0180347 : f32
      %113 = vector.broadcast %cst_41 : f32 to vector<32x1xf32>
      %c0_i32_42 = arith.constant 0 : i32
      %114 = vector.broadcast %c0_i32_42 : i32 to vector<1x128xi32>
      %115 = arith.cmpi eq, %0, %114 : vector<1x128xi32>
      %116 = vector.broadcast %113 : vector<32x1xf32> to vector<32x128xf32>
      %117 = arith.addf %112, %116 : vector<32x128xf32>
      %118 = vector.shape_cast %115 : vector<1x128xi1> to vector<1x128xi1>
      %119 = vector.broadcast %118 : vector<1x128xi1> to vector<32x128xi1>
      %120 = arith.select %119, %117, %112 : vector<32x128xi1>, vector<32x128xf32>
      %c0_i32_43 = arith.constant 0 : i32
      %121 = vector.broadcast %c0_i32_43 : i32 to vector<32x1xi32>
      %122 = arith.cmpi ne, %109, %121 : vector<32x1xi32>
      %cst_44 = arith.constant 0.000000e+00 : f32
      %123 = vector.shape_cast %122 : vector<32x1xi1> to vector<32x1xi1>
      %124 = vector.broadcast %123 : vector<32x1xi1> to vector<32x128xi1>
      %125 = vector.broadcast %cst_44 : f32 to vector<32x128xf32>
      %126 = arith.select %124, %120, %125 : vector<32x128xi1>, vector<32x128xf32>
      %c0_45 = arith.constant 0 : index
      %c0_46 = arith.constant 0 : index
      %127 = vector.load %arg4[%c0_45, %c0_46] : memref<32x128xf32, #tpu.memory_space<vmem>>, vector<32x128xf32>
      tpu.vector_store %arg4[%c0_45, %c0_46], %126 {strides = array<i32>} : memref<32x128xf32, #tpu.memory_space<vmem>>, vector<32x128xf32>,
    } else {
    }
    return
  }
  func.func @transform_0(%arg0: i32, %arg1: i32) -> (i32, i32) {
    %c0_i32 = arith.constant 0 : i32
    %c0_i32_0 = arith.constant 0 : i32
    return %arg0, %c0_i32 : i32, i32
  }
  func.func @transform_1(%arg0: i32, %arg1: i32) -> (i32, i32) {
    %c0_i32 = arith.constant 0 : i32
    return %arg0, %arg1 : i32, i32
  }
  func.func @transform_2(%arg0: i32, %arg1: i32) -> (i32, i32) {
    %c0_i32 = arith.constant 0 : i32
    %c0_i32_0 = arith.constant 0 : i32
    return %arg0, %c0_i32 : i32, i32
  }
}

</mosaic_0001>

<llo_original>
// kernel: tpu_custom_call.1
$region0: #{tpu_custom_call.1}
  #allocation0 [shape = 'u32[]', space=smem, size = 0x4, offset = 0x4, fixed_abs, tag = 'smem constant byte address 0x4 - core index']
  #allocation1 [shape = 'u32[144,128]{1,0:T(1,128)}', space=vmem, size = 0x12000, scoped, tag = 'internal scratch']
  #allocation2 [shape = 'f32[32,128]{1,0:T(8,128)}', space=vmem, size = 0x4000, scoped, tag = 'scratch operand']
  %s0 = inlined_call_operand.vmem [shape: s32[64,1], index: 0, kind: input, shape index: {}]
  %s1 = inlined_call_operand.hbm [shape: f32[64,1024], index: 1, kind: input, shape index: {}]
  %s2 = inlined_call_operand.hbm [shape: f32[64,128], index: 2, kind: output, shape index: {}]
  %s3 = sld [smem:[#allocation0]]
  $region53: #{tpu_custom_call.1} parent=0
    _
  %s5 = ssub.s32 1, %s3
  %s6 = scalar_select 0, %s5, %s3
  $region1: #{tpu_custom_call.1} parent=0
    #allocation3 [shape = 'u8[262144]{0}', space=vmem, size = 0x40000, scoped, tag = 'input window, operand 1']
    #allocation4 [shape = 's32[2]{0}', space=sflag, size = 0x8, scoped, tag = 'scoped memory for tpu_custom_call.1']
    #allocation5 [shape = 's32[2]{0}', space=sflag, size = 0x8, scoped, tag = 'scoped memory for tpu_custom_call.1']
    #allocation6 [shape = 'u8[32768]{0}', space=vmem, size = 0x8000, scoped, tag = 'output window, operand 0']
    %7 = vsyncpa [#allocation4], 0
    %s8 = scalar_lea.sflag [#allocation4], 1
    %9 = vsyncpa %s8, 0
    %10 = vsyncpa [#allocation5], 0
    %s11 = scalar_lea.sflag [#allocation5], 1
    %12 = vsyncpa %s11, 0
    loop: start=0, step=1, limit=4
    $region2: #{tpu_custom_call.1} parent=1 // loop_pre_header
      _
    $region3: #{tpu_custom_call.1} parent=1 // loop_header
      %s14 = sphi 0, %s18
      %p15 = scmp.ge.s32.totalorder %s14, 4
      %s21 = sphi 0, %s33
      %s22 = sphi 0, %s29
      %s23 = sphi 0, %s21
      %s24 = sphi 0, %s22
      %s25 = sphi 0, %s23
      %s26 = sphi 0, %s24
      %s36 = sphi 0, %s38
      %s39 = sphi 0, %s36
      %s40 = sphi 0, %s39
      %s56 = sphi 0, %s40
      %s64 = sphi 0, %s66
      %s67 = sphi 0, %s64
      %s68 = sphi 0, %s67
      %s84 = sphi 0, %s68
      %s90 = sphi 0, %s92
      %s93 = sphi 0, %s90
      %s94 = sphi 0, %s93
      %s110 = sphi 0, %s94
    $region4: #{tpu_custom_call.1} parent=1 // loop_header_branch
      %17 = sbr.rel (%p15) target = $region8
    $region5: #{tpu_custom_call.1} parent=1 // loop_body
      %s19 = ssub.s32 %s14, 1
      %s20 = ssub.s32 %s14, 2
      %s27 = sadd.s32 1, %s22
      %p28 = scmp.ge.s32.totalorder %s27, 1
      %s29 = scalar_select %p28, 0, %s27
      %s30 = sadd.s32 1, %s21
      %s31 = scalar_select %p28, %s30, %s21
      %p32 = scmp.ge.s32.totalorder %s31, 2
      %s33 = scalar_select %p32, 0, %s31
      %s34 = ssub.s32 %s21, %s33
      %p35 = scmp.eq.s32.totalorder %s34, 0
      %s37 = sadd.s32 %s36, 1
      %s38 = scalar_select %p35, %s36, %s37
      %p41 = pneg %p35
      %p42 = scmp.eq.s32.totalorder %s14, 1
      %p43 = por %p41, %p42
      %p44 = scmp.ne.s32.totalorder %s36, %s39
      %p45 = scmp.eq.s32.totalorder %s14, 0
      %p46 = por %p44, %p45
      %p47 = scmp.ne.s32.totalorder %s36, %s39
      %p48 = scmp.eq.s32.totalorder %s19, 1
      %p49 = por %p47, %p48
      %p50 = scmp.ne.s32.totalorder %s39, %s40
      %p51 = scmp.eq.s32.totalorder %s19, 0
      %p52 = por %p50, %p51
      %p53 = scmp.ne.s32.totalorder %s39, %s40
      %p54 = scmp.eq.s32.totalorder %s20, 1
      %p55 = por %p53, %p54
      %p57 = scmp.ne.s32.totalorder %s40, %s56
      %p58 = scmp.eq.s32.totalorder %s20, 0
      %p59 = por %p57, %p58
      %s60 = ssub.s32 %s21, %s33
      %s61 = ssub.s32 %s22, %s29
      %s62 = sor.u32 %s60, %s61
      %p63 = scmp.eq.s32.totalorder %s62, 0
      %s65 = sadd.s32 %s64, 1
      %s66 = scalar_select %p63, %s64, %s65
      %p69 = pneg %p63
      %p70 = scmp.eq.s32.totalorder %s14, 1
      %p71 = por %p69, %p70
      %p72 = scmp.ne.s32.totalorder %s64, %s67
      %p73 = scmp.eq.s32.totalorder %s14, 0
      %p74 = por %p72, %p73
      %p75 = scmp.ne.s32.totalorder %s64, %s67
      %p76 = scmp.eq.s32.totalorder %s19, 1
      %p77 = por %p75, %p76
      %p78 = scmp.ne.s32.totalorder %s67, %s68
      %p79 = scmp.eq.s32.totalorder %s19, 0
      %p80 = por %p78, %p79
      %p81 = scmp.ne.s32.totalorder %s67, %s68
      %p82 = scmp.eq.s32.totalorder %s20, 1
      %p83 = por %p81, %p82
      %p85 = scmp.ne.s32.totalorder %s68, %s84
      %p86 = scmp.eq.s32.totalorder %s20, 0
      %p87 = por %p85, %p86
      %s88 = ssub.s32 %s21, %s33
      %p89 = scmp.eq.s32.totalorder %s88, 0
      %s91 = sadd.s32 %s90, 1
      %s92 = scalar_select %p89, %s90, %s91
      %p95 = pneg %p89
      %p96 = scmp.eq.s32.totalorder %s14, 1
      %p97 = por %p95, %p96
      %p98 = scmp.ne.s32.totalorder %s90, %s93
      %p99 = scmp.eq.s32.totalorder %s14, 0
      %p100 = por %p98, %p99
      %p101 = scmp.ne.s32.totalorder %s90, %s93
      %p102 = scmp.eq.s32.totalorder %s19, 1
      %p103 = por %p101, %p102
      %p104 = scmp.ne.s32.totalorder %s93, %s94
      %p105 = scmp.eq.s32.totalorder %s19, 0
      %p106 = por %p104, %p105
      %p107 = scmp.ne.s32.totalorder %s93, %s94
      %p108 = scmp.eq.s32.totalorder %s20, 1
      %p109 = por %p107, %p108
      %p111 = scmp.ne.s32.totalorder %s94, %s110
      %p112 = scmp.eq.s32.totalorder %s20, 0
      %p113 = por %p111, %p112
      %p114 = scmp.le.s32.totalorder 1, %s14
      %p115 = scmp.lt.s32.totalorder %s14, 3
      %p116 = pnand %p114, %p115
      %p117 = pneg %p116
      // Predicated region
      $region9: #{tpu_custom_call.1} parent=5 // pred_check
        _
      $region10: #{tpu_custom_call.1} parent=5 // pred_check_branch
        %119 = sbr.rel (%p116) target = $region12
      $region11: #{tpu_custom_call.1} parent=5 // pred_region
        %s120 = ssub.s32 %s14, 1
      $region12: #{tpu_custom_call.1} parent=5 // pred_fallthru
        _
      %p121 = scmp.lt.s32.totalorder %s14, 2
      // Predicated region
      $region13: #{tpu_custom_call.1} parent=5 // pred_check
        %p122 = pneg %p121
      $region14: #{tpu_custom_call.1} parent=5 // pred_check_branch
        %124 = sbr.rel (%p122) target = $region16
      $region15: #{tpu_custom_call.1} parent=5 // pred_region
        // Predicated region
        $region17: #{tpu_custom_call.1} parent=15 // pred_check
          %p125 = pneg %p46
        $region18: #{tpu_custom_call.1} parent=15 // pred_check_branch
          %127 = sbr.rel (%p125) target = $region20
        $region19: #{tpu_custom_call.1} parent=15 // pred_region
          %s128 = smul.u32 4, %s21
          %p129 = scmp.lt.s32.totalorder %s128, 7
          %s130 = scalar_select %p129, %s128, 7
          %s131 = smul.addr %s130, 8
          %s132 = scalar_lea.vmem %s0, %s131
          %s133 = smul.u32 4, %s21
        $region20: #{tpu_custom_call.1} parent=15 // pred_fallthru
          _
        // Predicated region
        $region21: #{tpu_custom_call.1} parent=15 // pred_check
          %p134 = pneg %p74
        $region22: #{tpu_custom_call.1} parent=15 // pred_check_branch
          %136 = sbr.rel (%p134) target = $region24
        $region23: #{tpu_custom_call.1} parent=15 // pred_region
          %s137 = sand.u32 %s64, 1
          %s138 = scalar_lea.sflag [#allocation4], %s137
          %s139 = sand.u32 %s64, 1
          %s140 = smul.addr %s139, 256
          %s141 = scalar_lea.vmem [#allocation3], %s140
          %s142 = smul.u32 4, %s21
          %s143 = smul.u32 8, %s22
          %s145 = ssub.s32 4096, 4096
          %146 = vsyncadd %s138, %s145
          %s147 = smul.addr %s142, 8
          %s148 = sadd.s32 %s143, %s147
          %s149 = smul.addr %s148, 128
          %s150 = scalar_lea.hbm %s1, %s149
          %s151 = sshll.u32 %s141, 4
          %s152 = int_to_ptr.vmem [resolvable:$true] %s151
          %157 = dma.hbm_to_vmem [thread:$0]  %s150, 4096, %s152, %s138, 1024, 1024, 64
        $region24: #{tpu_custom_call.1} parent=15 // pred_fallthru
          _
      $region16: #{tpu_custom_call.1} parent=5 // pred_fallthru
        _
      %p158 = scmp.le.s32.totalorder 1, %s14
      %p159 = scmp.lt.s32.totalorder %s14, 3
      %p160 = pnand %p158, %p159
      %p161 = pneg %p160
      // Predicated region
      $region25: #{tpu_custom_call.1} parent=5 // pred_check
        _
      $region26: #{tpu_custom_call.1} parent=5 // pred_check_branch
        %163 = sbr.rel (%p160) target = $region28
      $region27: #{tpu_custom_call.1} parent=5 // pred_region
        %s164 = ssub.s32 %s14, 1
        %s165 = sand.u32 %s67, 1
        %s166 = scalar_lea.sflag [#allocation4], %s165
        %s167 = sand.u32 %s67, 1
        %s168 = smul.addr %s167, 256
        %s169 = scalar_lea.vmem [#allocation3], %s168
        // Predicated region
        $region29: #{tpu_custom_call.1} parent=27 // pred_check
          %p170 = pneg %p80
        $region30: #{tpu_custom_call.1} parent=27 // pred_check_branch
          %172 = sbr.rel (%p170) target = $region32
        $region31: #{tpu_custom_call.1} parent=27 // pred_region
          %173 = dma.done %s166, 4096
        $region32: #{tpu_custom_call.1} parent=27 // pred_fallthru
          _
        %s174 = smul.u32 4, %s23
        %p175 = scmp.lt.s32.totalorder %s174, 7
        %s176 = scalar_select %p175, %s174, 7
        %s177 = smul.addr %s176, 8
        %s178 = scalar_lea.vmem %s0, %s177
        %p179 = pneg %p52
        %p180 = pneg %p49
        %s181 = sand.u32 %s67, 1
        %s182 = scalar_lea.sflag [#allocation4], %s181
        %s183 = sand.u32 %s67, 1
        %s184 = smul.addr %s183, 256
        %s185 = scalar_lea.vmem [#allocation3], %s184
        %p186 = pneg %p80
        %p187 = pneg %p77
        %p188 = pneg %p106
        %p189 = pneg %p103
        %s190 = sand.u32 %s93, 1
        %s191 = scalar_lea.sflag [#allocation5], %s190
        %s192 = sand.u32 %s93, 1
        %s193 = smul.addr %s192, 32
        %s194 = scalar_lea.vmem [#allocation6], %s193
        %s195 = smul.u32 4, %s23
        %p196 = scmp.lt.s32.totalorder %s195, 7
        %s197 = scalar_select %p196, %s195, 7
        %s198 = smul.addr %s197, 8
        %s199 = scalar_lea.vmem %s0, %s198
        %s200 = smul.u32 4, %s23
        %s201 = smul.u32 4, %s23
        %s202 = smul.u32 8, %s24
        %s203 = smul.u32 4, %s23
        %v204 = vlaneseq
        %v205 = vand.u32 %v204, 127
        %p206 = scmp.eq.s32.totalorder %s24, 0
        // Predicated region
        $region33: #{tpu_custom_call.1} parent=27 // pred_check
          %p207 = pneg %p206
        $region34: #{tpu_custom_call.1} parent=27 // pred_check_branch
          %209 = sbr.rel (%p207) target = $region36
        $region35: #{tpu_custom_call.1} parent=27 // pred_region
          %210 = vst [vmem:[#allocation2] sm:$0xff] 0.0
          %211 = vst [vmem:[#allocation2 + $0x8] sm:$0xff] 0.0
          %212 = vst [vmem:[#allocation2 + $0x10] sm:$0xff] 0.0
          %213 = vst [vmem:[#allocation2 + $0x18] sm:$0xff] 0.0
        $region36: #{tpu_custom_call.1} parent=27 // pred_fallthru
          _
        %v214 = vld [vmem:[%s199] sm:$0xff]
        %v215 = vld [vmem:[%s199 + $0x8] sm:$0xff]
        %v216 = vld [vmem:[%s199 + $0x10] sm:$0xff]
        %v217 = vld [vmem:[%s199 + $0x18] sm:$0xff]
        %s218 = smul.u32 %s24, 1024
        %v219 = vstv %s218
        %v220 = vsub.s32 %v214, %v219
        %v221 = vsub.s32 %v215, %v219
        %v222 = vsub.s32 %v216, %v219
        %v223 = vsub.s32 %v217, %v219
        %v224 = vld [vmem:[%s169] sm:$0xff]
        %v225 = vld [vmem:[%s169 + $0x40] sm:$0xff]
        %v226 = vld [vmem:[%s169 + $0x80] sm:$0xff]
        %v227 = vld [vmem:[%s169 + $0xc0] sm:$0xff]
        %vm228 = vcmp.eq.s32.totalorder %v205, 0
        %v229 = vsel %vm228, 0.0, 1.0
        %230 = vset.pattern.permute.xlu0 0
        %231 = vperm.xlu0 %230, %v220
        %v232 = vpop.permute.xlu0 %231
        %233 = vset.pattern.permute.xlu0 0
        %234 = vperm.xlu0 %233, %v221
        %v235 = vpop.permute.xlu0 %234
        %236 = vset.pattern.permute.xlu0 0
        %237 = vperm.xlu0 %236, %v222
        %v238 = vpop.permute.xlu0 %237
        %239 = vset.pattern.permute.xlu0 0
        %240 = vperm.xlu0 %239, %v223
        %v241 = vpop.permute.xlu0 %240
        %vm242 = vcmp.eq.s32.totalorder %v205, %v232
        %vm243 = vcmp.eq.s32.totalorder %v205, %v235
        %vm244 = vcmp.eq.s32.totalorder %v205, %v238
        %vm245 = vcmp.eq.s32.totalorder %v205, %v241
        %v246 = vsel %vm242, 9198.0, %v229
        %v247 = vsel %vm243, 9198.0, %v229
        %v248 = vsel %vm244, 9198.0, %v229
        %v249 = vsel %vm245, 9198.0, %v229
        %v250 = vmul.f32 %v246, %v224
        %v251 = vmul.f32 %v247, %v225
        %v252 = vmul.f32 %v248, %v226
        %v253 = vmul.f32 %v249, %v227
        %v254 = vadd.f32 %v250, 0.0
        %v255 = vadd.f32 %v251, 0.0
        %v256 = vadd.f32 %v252, 0.0
        %v257 = vadd.f32 %v253, 0.0
        %v258 = vadd.s32 %v205, 128
        %v259 = vld [vmem:[%s169 + $0x8] sm:$0xff]
        %v260 = vld [vmem:[%s169 + $0x48] sm:$0xff]
        %v261 = vld [vmem:[%s169 + $0x88] sm:$0xff]
        %v262 = vld [vmem:[%s169 + $0xc8] sm:$0xff]
        %vm263 = vcmp.eq.s32.totalorder %v258, %v232
        %vm264 = vcmp.eq.s32.totalorder %v258, %v235
        %vm265 = vcmp.eq.s32.totalorder %v258, %v238
        %vm266 = vcmp.eq.s32.totalorder %v258, %v241
        %v267 = vsel %vm263, 9198.0, 1.0
        %v268 = vsel %vm264, 9198.0, 1.0
        %v269 = vsel %vm265, 9198.0, 1.0
        %v270 = vsel %vm266, 9198.0, 1.0
        %v271 = vmul.f32 %v267, %v259
        %v272 = vmul.f32 %v268, %v260
        %v273 = vmul.f32 %v269, %v261
        %v274 = vmul.f32 %v270, %v262
        %v275 = vadd.f32 %v254, %v271
        %v276 = vadd.f32 %v255, %v272
        %v277 = vadd.f32 %v256, %v273
        %v278 = vadd.f32 %v257, %v274
        %v279 = vadd.s32 %v205, 256
        %v280 = vld [vmem:[%s169 + $0x10] sm:$0xff]
        %v281 = vld [vmem:[%s169 + $0x50] sm:$0xff]
        %v282 = vld [vmem:[%s169 + $0x90] sm:$0xff]
        %v283 = vld [vmem:[%s169 + $0xd0] sm:$0xff]
        %vm284 = vcmp.eq.s32.totalorder %v279, %v232
        %vm285 = vcmp.eq.s32.totalorder %v279, %v235
        %vm286 = vcmp.eq.s32.totalorder %v279, %v238
        %vm287 = vcmp.eq.s32.totalorder %v279, %v241
        %v288 = vsel %vm284, 9198.0, 1.0
        %v289 = vsel %vm285, 9198.0, 1.0
        %v290 = vsel %vm286, 9198.0, 1.0
        %v291 = vsel %vm287, 9198.0, 1.0
        %v292 = vmul.f32 %v288, %v280
        %v293 = vmul.f32 %v289, %v281
        %v294 = vmul.f32 %v290, %v282
        %v295 = vmul.f32 %v291, %v283
        %v296 = vadd.f32 %v275, %v292
        %v297 = vadd.f32 %v276, %v293
        %v298 = vadd.f32 %v277, %v294
        %v299 = vadd.f32 %v278, %v295
        %v300 = vadd.s32 %v205, 384
        %v301 = vld [vmem:[%s169 + $0x18] sm:$0xff]
        %v302 = vld [vmem:[%s169 + $0x58] sm:$0xff]
        %v303 = vld [vmem:[%s169 + $0x98] sm:$0xff]
        %v304 = vld [vmem:[%s169 + $0xd8] sm:$0xff]
        %vm305 = vcmp.eq.s32.totalorder %v300, %v232
        %vm306 = vcmp.eq.s32.totalorder %v300, %v235
        %vm307 = vcmp.eq.s32.totalorder %v300, %v238
        %vm308 = vcmp.eq.s32.totalorder %v300, %v241
        %v309 = vsel %vm305, 9198.0, 1.0
        %v310 = vsel %vm306, 9198.0, 1.0
        %v311 = vsel %vm307, 9198.0, 1.0
        %v312 = vsel %vm308, 9198.0, 1.0
        %v313 = vmul.f32 %v309, %v301
        %v314 = vmul.f32 %v310, %v302
        %v315 = vmul.f32 %v311, %v303
        %v316 = vmul.f32 %v312, %v304
        %v317 = vadd.f32 %v296, %v313
        %v318 = vadd.f32 %v297, %v314
        %v319 = vadd.f32 %v298, %v315
        %v320 = vadd.f32 %v299, %v316
        %v321 = vadd.s32 %v205, 512
        %v322 = vld [vmem:[%s169 + $0x20] sm:$0xff]
        %v323 = vld [vmem:[%s169 + $0x60] sm:$0xff]
        %v324 = vld [vmem:[%s169 + $0xa0] sm:$0xff]
        %v325 = vld [vmem:[%s169 + $0xe0] sm:$0xff]
        %vm326 = vcmp.eq.s32.totalorder %v321, %v232
        %vm327 = vcmp.eq.s32.totalorder %v321, %v235
        %vm328 = vcmp.eq.s32.totalorder %v321, %v238
        %vm329 = vcmp.eq.s32.totalorder %v321, %v241
        %v330 = vsel %vm326, 9198.0, 1.0
        %v331 = vsel %vm327, 9198.0, 1.0
        %v332 = vsel %vm328, 9198.0, 1.0
        %v333 = vsel %vm329, 9198.0, 1.0
        %v334 = vmul.f32 %v330, %v322
        %v335 = vmul.f32 %v331, %v323
        %v336 = vmul.f32 %v332, %v324
        %v337 = vmul.f32 %v333, %v325
        %v338 = vadd.f32 %v317, %v334
        %v339 = vadd.f32 %v318, %v335
        %v340 = vadd.f32 %v319, %v336
        %v341 = vadd.f32 %v320, %v337
        %v342 = vadd.s32 %v205, 640
        %v343 = vld [vmem:[%s169 + $0x28] sm:$0xff]
        %v344 = vld [vmem:[%s169 + $0x68] sm:$0xff]
        %v345 = vld [vmem:[%s169 + $0xa8] sm:$0xff]
        %v346 = vld [vmem:[%s169 + $0xe8] sm:$0xff]
        %vm347 = vcmp.eq.s32.totalorder %v342, %v232
        %vm348 = vcmp.eq.s32.totalorder %v342, %v235
        %vm349 = vcmp.eq.s32.totalorder %v342, %v238
        %vm350 = vcmp.eq.s32.totalorder %v342, %v241
        %v351 = vsel %vm347, 9198.0, 1.0
        %v352 = vsel %vm348, 9198.0, 1.0
        %v353 = vsel %vm349, 9198.0, 1.0
        %v354 = vsel %vm350, 9198.0, 1.0
        %v355 = vmul.f32 %v351, %v343
        %v356 = vmul.f32 %v352, %v344
        %v357 = vmul.f32 %v353, %v345
        %v358 = vmul.f32 %v354, %v346
        %v359 = vadd.f32 %v338, %v355
        %v360 = vadd.f32 %v339, %v356
        %v361 = vadd.f32 %v340, %v357
        %v362 = vadd.f32 %v341, %v358
        %v363 = vadd.s32 %v205, 768
        %v364 = vld [vmem:[%s169 + $0x30] sm:$0xff]
        %v365 = vld [vmem:[%s169 + $0x70] sm:$0xff]
        %v366 = vld [vmem:[%s169 + $0xb0] sm:$0xff]
        %v367 = vld [vmem:[%s169 + $0xf0] sm:$0xff]
        %vm368 = vcmp.eq.s32.totalorder %v363, %v232
        %vm369 = vcmp.eq.s32.totalorder %v363, %v235
        %vm370 = vcmp.eq.s32.totalorder %v363, %v238
        %vm371 = vcmp.eq.s32.totalorder %v363, %v241
        %v372 = vsel %vm368, 9198.0, 1.0
        %v373 = vsel %vm369, 9198.0, 1.0
        %v374 = vsel %vm370, 9198.0, 1.0
        %v375 = vsel %vm371, 9198.0, 1.0
        %v376 = vmul.f32 %v372, %v364
        %v377 = vmul.f32 %v373, %v365
        %v378 = vmul.f32 %v374, %v366
        %v379 = vmul.f32 %v375, %v367
        %v380 = vadd.f32 %v359, %v376
        %v381 = vadd.f32 %v360, %v377
        %v382 = vadd.f32 %v361, %v378
        %v383 = vadd.f32 %v362, %v379
        %v384 = vadd.s32 %v205, 896
        %v385 = vld [vmem:[%s169 + $0x38] sm:$0xff]
        %v386 = vld [vmem:[%s169 + $0x78] sm:$0xff]
        %v387 = vld [vmem:[%s169 + $0xb8] sm:$0xff]
        %v388 = vld [vmem:[%s169 + $0xf8] sm:$0xff]
        %vm389 = vcmp.eq.s32.totalorder %v384, %v232
        %vm390 = vcmp.eq.s32.totalorder %v384, %v235
        %vm391 = vcmp.eq.s32.totalorder %v384, %v238
        %vm392 = vcmp.eq.s32.totalorder %v384, %v241
        %v393 = vsel %vm389, 9198.0, 1.0
        %v394 = vsel %vm390, 9198.0, 1.0
        %v395 = vsel %vm391, 9198.0, 1.0
        %v396 = vsel %vm392, 9198.0, 1.0
        %v397 = vmul.f32 %v393, %v385
        %v398 = vmul.f32 %v394, %v386
        %v399 = vmul.f32 %v395, %v387
        %v400 = vmul.f32 %v396, %v388
        %v401 = vadd.f32 %v380, %v397
        %v402 = vadd.f32 %v381, %v398
        %v403 = vadd.f32 %v382, %v399
        %v404 = vadd.f32 %v383, %v400
        %v405 = vld [vmem:[#allocation2] sm:$0xff]
        %v406 = vld [vmem:[#allocation2 + $0x8] sm:$0xff]
        %v407 = vld [vmem:[#allocation2 + $0x10] sm:$0xff]
        %v408 = vld [vmem:[#allocation2 + $0x18] sm:$0xff]
        %v409 = vadd.f32 %v405, %v401
        %v410 = vadd.f32 %v406, %v402
        %v411 = vadd.f32 %v407, %v403
        %v412 = vadd.f32 %v408, %v404
        %413 = vst [vmem:[#allocation2] sm:$0xff] %v409
        %414 = vst [vmem:[#allocation2 + $0x8] sm:$0xff] %v410
        %415 = vst [vmem:[#allocation2 + $0x10] sm:$0xff] %v411
        %416 = vst [vmem:[#allocation2 + $0x18] sm:$0xff] %v412
        // Predicated region
        $region37: #{tpu_custom_call.1} parent=27 // pred_check
          %p417 = pneg %p206
        $region38: #{tpu_custom_call.1} parent=27 // pred_check_branch
          %419 = sbr.rel (%p417) target = $region40
        $region39: #{tpu_custom_call.1} parent=27 // pred_region
          %v420 = vld [vmem:[%s199] sm:$0xff]
          %v421 = vld [vmem:[%s199 + $0x8] sm:$0xff]
          %v422 = vld [vmem:[%s199 + $0x10] sm:$0xff]
          %v423 = vld [vmem:[%s199 + $0x18] sm:$0xff]
          %v424 = vld [vmem:[#allocation2] sm:$0xff]
          %v425 = vld [vmem:[#allocation2 + $0x8] sm:$0xff]
          %v426 = vld [vmem:[#allocation2 + $0x10] sm:$0xff]
          %v427 = vld [vmem:[#allocation2 + $0x18] sm:$0xff]
          %v428 = vmul.f32 %v424, -9.784736e-05
          %v429 = vmul.f32 %v425, -9.784736e-05
          %v430 = vmul.f32 %v426, -9.784736e-05
          %v431 = vmul.f32 %v427, -9.784736e-05
          %v432 = vadd.f32 %v428, -1.0180347
          %v433 = vadd.f32 %v429, -1.0180347
          %v434 = vadd.f32 %v430, -1.0180347
          %v435 = vadd.f32 %v431, -1.0180347
          %v436 = vsel %vm228, 1, 0
          %vm437 = vcmp.eq.s32.totalorder %v436, 1
          %v438 = vsel %vm437, %v432, %v428
          %v439 = vsel %vm437, %v433, %v429
          %v440 = vsel %vm437, %v434, %v430
          %v441 = vsel %vm437, %v435, %v431
          %vm442 = vcmp.ne.s32.totalorder %v420, 0
          %vm443 = vcmp.ne.s32.totalorder %v421, 0
          %vm444 = vcmp.ne.s32.totalorder %v422, 0
          %vm445 = vcmp.ne.s32.totalorder %v423, 0
          %v446 = vsel %vm442, 1, 0
          %v447 = vsel %vm443, 1, 0
          %v448 = vsel %vm444, 1, 0
          %v449 = vsel %vm445, 1, 0
          %450 = vset.pattern.permute.xlu0 0
          %451 = vperm.xlu0 %450, %v446
          %v452 = vpop.permute.xlu0 %451
          %453 = vset.pattern.permute.xlu0 0
          %454 = vperm.xlu0 %453, %v447
          %v455 = vpop.permute.xlu0 %454
          %456 = vset.pattern.permute.xlu0 0
          %457 = vperm.xlu0 %456, %v448
          %v458 = vpop.permute.xlu0 %457
          %459 = vset.pattern.permute.xlu0 0
          %460 = vperm.xlu0 %459, %v449
          %v461 = vpop.permute.xlu0 %460
          %vm462 = vcmp.eq.s32.totalorder %v452, 1
          %vm463 = vcmp.eq.s32.totalorder %v455, 1
          %vm464 = vcmp.eq.s32.totalorder %v458, 1
          %vm465 = vcmp.eq.s32.totalorder %v461, 1
          %v466 = vsel %vm462, %v438, 0.0
          %v467 = vsel %vm463, %v439, 0.0
          %v468 = vsel %vm464, %v440, 0.0
          %v469 = vsel %vm465, %v441, 0.0
          %470 = vst [vmem:[%s194] sm:$0xff] %v466
          %471 = vst [vmem:[%s194 + $0x8] sm:$0xff] %v467
          %472 = vst [vmem:[%s194 + $0x10] sm:$0xff] %v468
          %473 = vst [vmem:[%s194 + $0x18] sm:$0xff] %v469
        $region40: #{tpu_custom_call.1} parent=27 // pred_fallthru
          _
        %s474 = sand.u32 %s93, 1
        %s475 = scalar_lea.sflag [#allocation5], %s474
        %s476 = sand.u32 %s93, 1
        %s477 = smul.addr %s476, 32
        %s478 = scalar_lea.vmem [#allocation6], %s477
        // Predicated region
        $region41: #{tpu_custom_call.1} parent=27 // pred_check
          %p479 = pneg %p103
        $region42: #{tpu_custom_call.1} parent=27 // pred_check_branch
          %481 = sbr.rel (%p479) target = $region44
        $region43: #{tpu_custom_call.1} parent=27 // pred_region
          %s482 = smul.u32 4, %s23
          %s484 = ssub.s32 512, 512
          %485 = vsyncadd %s475, %s484
          %s486 = smul.addr %s482, 128
          %s487 = scalar_lea.hbm %s2, %s486
          %s488 = sshll.u32 %s478, 4
          %s489 = int_to_ptr.vmem [resolvable:$true] %s488
          %494 = dma.vmem_to_hbm [thread:$0]  %s489, 512, %s487, %s475, 128, 128, 8
        $region44: #{tpu_custom_call.1} parent=27 // pred_fallthru
          _
      $region28: #{tpu_custom_call.1} parent=5 // pred_fallthru
        _
      %p495 = scmp.le.s32.totalorder 2, %s14
      // Predicated region
      $region45: #{tpu_custom_call.1} parent=5 // pred_check
        %p496 = pneg %p495
      $region46: #{tpu_custom_call.1} parent=5 // pred_check_branch
        %498 = sbr.rel (%p496) target = $region48
      $region47: #{tpu_custom_call.1} parent=5 // pred_region
        %s499 = ssub.s32 %s14, 2
        // Predicated region
        $region49: #{tpu_custom_call.1} parent=47 // pred_check
          %p500 = pneg %p109
        $region50: #{tpu_custom_call.1} parent=47 // pred_check_branch
          %502 = sbr.rel (%p500) target = $region52
        $region51: #{tpu_custom_call.1} parent=47 // pred_region
          %s503 = sand.u32 %s94, 1
          %s504 = scalar_lea.sflag [#allocation5], %s503
          %s505 = sand.u32 %s94, 1
          %s506 = smul.addr %s505, 32
          %s507 = scalar_lea.vmem [#allocation6], %s506
          %508 = dma.done %s504, 512
        $region52: #{tpu_custom_call.1} parent=47 // pred_fallthru
          _
      $region48: #{tpu_custom_call.1} parent=5 // pred_fallthru
        _
    $region6: #{tpu_custom_call.1} parent=1 // loop_footer
      %s18 = sadd.s32 1, %s14
    $region7: #{tpu_custom_call.1} parent=1 // loop_footer_branch
      %13 = sbr.rel target = $region3
    $region8: #{tpu_custom_call.1} parent=1 // loop_exit
      _
    %509 = vsyncpa [#allocation4], 1
    %s510 = scalar_lea.sflag [#allocation4], 1
    %511 = vsyncpa %s510, 1
    %512 = vsyncpa [#allocation5], 1
    %s513 = scalar_lea.sflag [#allocation5], 1
    %514 = vsyncpa %s513, 1

</llo_original>
